<compile_context>
chip_gen: v5e
topology: v5e:2x2
jax: 0.10.0
libtpu: 0.0.40
codegen_flags: <defaults>
</compile_context>

<pallas_src>
import jax
import jax.numpy as jnp
from jax.experimental import pallas as pl
from jax.experimental.pallas import tpu as pltpu

EPS = 1e-40  # matches ArithmeticWeightedEnsemble.EPS


def _ensemble_kernel(x_ref, w_ref, b_ref, o_ref):
    # x_ref: (TB, H, C) batch-tiled input block (native layout, no transpose)
    # w_ref: (1, H, 1)  raw weight (exp applied in-kernel)
    # b_ref: (1, C)     raw bias
    # o_ref: (TB, C)
    ew = jnp.exp(w_ref[...].astype(jnp.float32))              # (1, H, 1)
    eb = jnp.exp(b_ref[...].astype(jnp.float32))              # (1, C)

    xe = jnp.exp(x_ref[...].astype(jnp.float32))              # (TB, H, C), EUP
    # Weighted head sum: VPU mul + XLU sublane reduce over the (small) H axis.
    num = jnp.sum(xe * ew, axis=1) + eb                       # (TB, C)

    denom = jnp.sum(num, axis=-1, keepdims=True)              # (TB, 1), XLU
    inv = 1.0 / denom                                         # TB recips only
    o_ref[...] = jnp.log(num * inv + EPS).astype(o_ref.dtype)


def arithmetic_weighted_ensemble(x, weight, bias, *, block_batch=None,
                                 target_block_bytes=2 << 20):
    """x: (B, H, C), weight: (1, H, 1), bias: (1, C) -> (B, C)."""
    B, H, C = x.shape
    itemsize = jnp.dtype(x.dtype).itemsize

    # Padded tile dims (sublane/lane) for VMEM budgeting.
    h_pad = max(8, ((H + 7) // 8) * 8)
    c_pad = max(128, ((C + 127) // 128) * 128)

    if block_batch is None:
        # ~2 MiB x-block per buffer: amortizes the ~0.35 us per-grid-step
        # overhead; double-buffered input + output + f32 temporaries stay far
        # below the v7x 64 MiB physical VMEM.
        tb = max(8, (target_block_bytes // max(1, h_pad * c_pad * itemsize))
                 // 8 * 8)
        block_batch = B if B <= tb else tb
    tb = block_batch
    assert tb == B or tb % 8 == 0, "block_batch must be a multiple of 8 or == B"

    grid = (pl.cdiv(B, tb),)

    x_blk_bytes = tb * h_pad * c_pad * itemsize
    o_blk_bytes = tb * c_pad * itemsize
    f32_tmp_bytes = tb * h_pad * c_pad * 4          # exp(x) temp inside kernel
    vmem_limit = int(min(max(2 * x_blk_bytes + 2 * o_blk_bytes
                             + f32_tmp_bytes + (8 << 20), 16 << 20), 48 << 20))

    return pl.pallas_call(
        _ensemble_kernel,
        out_shape=jax.ShapeDtypeStruct((B, C), x.dtype),
        grid_spec=pltpu.PrefetchScalarGridSpec(
            num_scalar_prefetch=0,
            grid=grid,
            in_specs=[
                pl.BlockSpec((tb, H, C), lambda i: (i, 0, 0)),   # batch-tiled x
                pl.BlockSpec((1, H, 1), lambda i: (0, 0, 0)),    # resident weight
                pl.BlockSpec((1, C), lambda i: (0, 0)),          # resident bias
            ],
            out_specs=pl.BlockSpec((tb, C), lambda i: (i, 0)),
        ),
        compiler_params=pltpu.CompilerParams(
            dimension_semantics=("parallel",),
            vmem_limit_bytes=vmem_limit,
        ),
    )(x, weight, bias)


def _reference(x, weight, bias):
    # Pure-JAX mirror of the PyTorch forward.
    ex = jnp.exp(x)
    s = jnp.sum(ex * jnp.exp(weight), axis=1) + jnp.exp(bias)
    s = s / jnp.sum(s, axis=1, keepdims=True)
    return jnp.log(s + EPS)


if __name__ == "__main__":
    key = jax.random.PRNGKey(0)
    k_x, k_w = jax.random.split(key)

    batch = 2
    num_heads = 4
    num_classes = 32

    # Parameter init matching the module's __init__:
    #   weight ~ Normal(0, 0.01) of shape (1, H, 1); bias = zeros(1, C)
    weight = 0.01 * jax.random.normal(k_w, (1, num_heads, 1), dtype=jnp.float32)
    bias = jnp.zeros((1, num_classes), dtype=jnp.float32)
    x = jax.random.normal(k_x, (batch, num_heads, num_classes), dtype=jnp.float32)

    out = arithmetic_weighted_ensemble(x, weight, bias)
    out = jax.block_until_ready(out)

    ref = _reference(x, weight, bias)
    assert out.shape == (batch, num_classes)
    assert jnp.allclose(out, ref, atol=1e-4, rtol=1e-4), "mismatch vs reference"

    print("KERNEL_OK")
</pallas_src>

<mosaic_0001>
module attributes {stable_mosaic.version = 11 : i64} {
  func.func @_ensemble_kernel(%arg0: i32, %arg1: memref<2x4x32xf32, #tpu.memory_space<vmem>>, %arg2: memref<1x4x1xf32, #tpu.memory_space<vmem>>, %arg3: memref<1x32xf32, #tpu.memory_space<vmem>>, %arg4: memref<2x32xf32, #tpu.memory_space<vmem>>) attributes {dimension_semantics = [#tpu.dimension_semantics<parallel>], iteration_bounds = array<i64: 1>, scalar_prefetch = 0 : i64, scratch_operands = 0 : i64, tpu.core_type = #tpu.core_type<tc>, window_params = [{transform_indices = @transform_0, window_bounds = array<i64: 2, 4, 32>}, {pipeline_mode = #tpu.pipeline_mode<synchronous>, transform_indices = @transform_1, window_bounds = array<i64: 1, 4, 1>}, {pipeline_mode = #tpu.pipeline_mode<synchronous>, transform_indices = @transform_2, window_bounds = array<i64: 1, 32>}, {transform_indices = @transform_3, window_bounds = array<i64: 2, 32>}]} {
    %c0 = arith.constant 0 : index
    %c0_0 = arith.constant 0 : index
    %c0_1 = arith.constant 0 : index
    %0 = vector.load %arg2[%c0, %c0_0, %c0_1] : memref<1x4x1xf32, #tpu.memory_space<vmem>>, vector<1x4x1xf32>
    %1 = math.exp %0 : vector<1x4x1xf32>
    %c0_2 = arith.constant 0 : index
    %c0_3 = arith.constant 0 : index
    %2 = vector.load %arg3[%c0_2, %c0_3] : memref<1x32xf32, #tpu.memory_space<vmem>>, vector<1x32xf32>
    %3 = math.exp %2 : vector<1x32xf32>
    %c0_4 = arith.constant 0 : index
    %c0_5 = arith.constant 0 : index
    %c0_6 = arith.constant 0 : index
    %4 = vector.load %arg1[%c0_4, %c0_5, %c0_6] : memref<2x4x32xf32, #tpu.memory_space<vmem>>, vector<2x4x32xf32>
    %5 = math.exp %4 : vector<2x4x32xf32>
    %6 = vector.broadcast %1 : vector<1x4x1xf32> to vector<2x4x32xf32>
    %7 = arith.mulf %5, %6 : vector<2x4x32xf32>
    %cst = arith.constant dense<0.000000e+00> : vector<2x32xf32>
    %8 = vector.multi_reduction <add>, %7, %cst [1] : vector<2x4x32xf32> to vector<2x32xf32>
    %9 = vector.broadcast %3 : vector<1x32xf32> to vector<2x32xf32>
    %10 = arith.addf %8, %9 : vector<2x32xf32>
    %cst_7 = arith.constant dense<0.000000e+00> : vector<2xf32>
    %11 = vector.multi_reduction <add>, %10, %cst_7 [1] : vector<2x32xf32> to vector<2xf32>
    %12 = vector.shape_cast %11 : vector<2xf32> to vector<2x1xf32>
    %cst_8 = arith.constant 1.000000e+00 : f32
    %13 = vector.broadcast %cst_8 : f32 to vector<2x1xf32>
    %14 = arith.divf %13, %12 : vector<2x1xf32>
    %15 = vector.broadcast %14 : vector<2x1xf32> to vector<2x32xf32>
    %16 = arith.mulf %10, %15 : vector<2x32xf32>
    %cst_9 = arith.constant 9.999940e-41 : f32
    %17 = vector.broadcast %cst_9 : f32 to vector<2x32xf32>
    %18 = arith.addf %16, %17 : vector<2x32xf32>
    %19 = math.log %18 : vector<2x32xf32>
    %c0_10 = arith.constant 0 : index
    %c0_11 = arith.constant 0 : index
    %20 = vector.load %arg4[%c0_10, %c0_11] : memref<2x32xf32, #tpu.memory_space<vmem>>, vector<2x32xf32>
    tpu.vector_store %arg4[%c0_10, %c0_11], %19 {strides = array<i32>} : memref<2x32xf32, #tpu.memory_space<vmem>>, vector<2x32xf32>,
    return
  }
  func.func @transform_0(%arg0: i32) -> (i32, i32, i32) {
    %c0_i32 = arith.constant 0 : i32
    %c0_i32_0 = arith.constant 0 : i32
    %c0_i32_1 = arith.constant 0 : i32
    return %arg0, %c0_i32, %c0_i32_0 : i32, i32, i32
  }
  func.func @transform_1(%arg0: i32) -> (i32, i32, i32) {
    %c0_i32 = arith.constant 0 : i32
    %c0_i32_0 = arith.constant 0 : i32
    %c0_i32_1 = arith.constant 0 : i32
    %c0_i32_2 = arith.constant 0 : i32
    return %c0_i32, %c0_i32_0, %c0_i32_1 : i32, i32, i32
  }
  func.func @transform_2(%arg0: i32) -> (i32, i32) {
    %c0_i32 = arith.constant 0 : i32
    %c0_i32_0 = arith.constant 0 : i32
    %c0_i32_1 = arith.constant 0 : i32
    return %c0_i32, %c0_i32_0 : i32, i32
  }
  func.func @transform_3(%arg0: i32) -> (i32, i32) {
    %c0_i32 = arith.constant 0 : i32
    %c0_i32_0 = arith.constant 0 : i32
    return %arg0, %c0_i32 : i32, i32
  }
}

</mosaic_0001>

<llo_original>
// kernel: tpu_custom_call.1
$region0: #{tpu_custom_call.1}
  #allocation0 [shape = 'u32[]', space=smem, size = 0x4, offset = 0x4, fixed_abs, tag = 'smem constant byte address 0x4 - core index']
  #allocation1 [shape = 'u32[72,128]{1,0:T(1,128)}', space=vmem, size = 0x9000, scoped, tag = 'internal scratch']
  %s0 = inlined_call_operand.hbm [shape: f32[2,4,32], index: 0, kind: input, shape index: {}]
  %s1 = inlined_call_operand.vmem [shape: f32[1,4,1], index: 1, kind: input, shape index: {}]
  %s2 = inlined_call_operand.vmem [shape: f32[1,32], index: 2, kind: input, shape index: {}]
  %s3 = inlined_call_operand.hbm [shape: f32[2,32], index: 3, kind: output, shape index: {}]
  %s4 = sld [smem:[#allocation0]]
  $region26: #{tpu_custom_call.1} parent=0
    _
  %s6 = ssub.s32 1, %s4
  %s7 = scalar_select 0, %s6, %s4
  $region1: #{tpu_custom_call.1} parent=0
    #allocation2 [shape = 'u8[4096]{0}', space=vmem, size = 0x1000, scoped, tag = 'input window, operand 0, single buffered']
    #allocation3 [shape = 's32[1]{0}', space=sflag, size = 0x4, scoped, tag = 'scoped memory for tpu_custom_call.1']
    #allocation4 [shape = 's32[1]{0}', space=sflag, size = 0x4, scoped, tag = 'scoped memory for tpu_custom_call.1']
    #allocation5 [shape = 'u8[1024]{0}', space=vmem, size = 0x400, scoped, tag = 'output window, operand 0, single buffered']
    %8 = vsyncpa [#allocation3], 0
    %9 = vsyncpa [#allocation4], 0
    // Predicated region
    $region2: #{tpu_custom_call.1} parent=1 // pred_check
      _
    $region3: #{tpu_custom_call.1} parent=1 // pred_check_branch
      %11 = sbr.rel (0) target = $region5
    $region4: #{tpu_custom_call.1} parent=1 // pred_region
      %13 = vsyncadd [#allocation3], 0
      %s14 = sshll.u32 %s0, 4
      %s15 = int_to_ptr.hbm [resolvable:$true] %s14
      %s16 = sshll.u32 [#allocation2], 4
      %s17 = int_to_ptr.vmem [resolvable:$true] %s16
      %22 = dma.hbm_to_vmem [thread:$0]  %s15, 128, %s17, [#allocation3], 64, 64, 4
    $region5: #{tpu_custom_call.1} parent=1 // pred_fallthru
      _
    // Predicated region
    $region6: #{tpu_custom_call.1} parent=1 // pred_check
      _
    $region7: #{tpu_custom_call.1} parent=1 // pred_check_branch
      %24 = sbr.rel (0) target = $region9
    $region8: #{tpu_custom_call.1} parent=1 // pred_region
      _
    $region9: #{tpu_custom_call.1} parent=1 // pred_fallthru
      _
    // Predicated region
    $region10: #{tpu_custom_call.1} parent=1 // pred_check
      _
    $region11: #{tpu_custom_call.1} parent=1 // pred_check_branch
      %26 = sbr.rel (0) target = $region13
    $region12: #{tpu_custom_call.1} parent=1 // pred_region
      _
    $region13: #{tpu_custom_call.1} parent=1 // pred_fallthru
      _
    // Predicated region
    $region14: #{tpu_custom_call.1} parent=1 // pred_check
      _
    $region15: #{tpu_custom_call.1} parent=1 // pred_check_branch
      %28 = sbr.rel (0) target = $region17
    $region16: #{tpu_custom_call.1} parent=1 // pred_region
      %30 = dma.done [#allocation3], 128
    $region17: #{tpu_custom_call.1} parent=1 // pred_fallthru
      _
    %v31 = vld [vmem:[%s1] sm:$0xf]
    %v32 = vmul.f32 %v31, 1.442695
    %v33 = vpow.pop %v32
    %v34 = vld [vmem:[%s2] sm:$0x1]
    %v35 = vmul.f32 %v34, 1.442695
    %v36 = vpow.pop %v35
    %v37 = vld [vmem:[#allocation2] sm:$0xf]
    %v38 = vld [vmem:[#allocation2 + $0x4] sm:$0xf]
    %v39 = vmul.f32 %v37, 1.442695
    %v40 = vpow.pop %v39
    %v41 = vmul.f32 %v38, 1.442695
    %v42 = vpow.pop %v41
    %44 = vset.pattern.permute.xlu0 0
    %45 = vperm.xlu0 %44, %v33
    %v46 = vpop.permute.xlu0 %45
    %v48 = vmul.f32 %v40, %v46
    %v49 = vmul.f32 %v42, %v46
    %vm50 = vcmask 257024
    %v51 = vsel %vm50, %v48, 0.0
    %v52 = vrot.slane %v51, 4
    %v53 = vadd.f32 %v51, %v52
    %v54 = vrot.slane %v53, 2
    %v55 = vadd.f32 %v53, %v54
    %v56 = vrot.slane %v55, 1
    %v57 = vadd.f32 %v55, %v56
    %v58 = vsel %vm50, %v49, 0.0
    %v59 = vrot.slane %v58, 4
    %v60 = vadd.f32 %v58, %v59
    %v61 = vrot.slane %v60, 2
    %v62 = vadd.f32 %v60, %v61
    %v63 = vrot.slane %v62, 1
    %v64 = vadd.f32 %v62, %v63
    %v66 = vperm.slane %v36, 0
    %v68 = vadd.f32 %v57, %v66
    %v69 = vadd.f32 %v64, %v66
    %v72 = vrot.slane %v69, 7
    %vm73 = vcmask 1041409
    %v74 = vsel %vm73, %v72, %v68
    %vm76 = vcmask 254976
    %v77 = vsel %vm76, %v74, 0.0
    %78 = vadd.xlane.f32.xlu0 %v77
    %v79 = vpop.xlane.xlu0 %78
    %v80 = vrcp.pop %v79
    %v81 = vmul.f32 %v79, %v80
    %v82 = vsub.f32 1.0, %v81
    %v83 = vmul.f32 %v80, %v82
    %v84 = vadd.f32 %v80, %v83
    %vm85 = vweird.f32 %v79
    %vm86 = vweird.f32 %v80
    %vm87 = vmor %vm85, %vm86
    %v88 = vsel %vm87, %v80, %v84
    %v89 = vand.u32 2147483647, %v79
    %vm90 = vcmp.eq.f32.partialorder %v89, 8.507059e+37
    %v91 = vand.u32 %v79, 2147483648
    %v92 = vor.u32 1.1754944e-38, %v91
    %v93 = vsel %vm90, %v92, %v88
    %v94 = vmul.f32 1.0, %v93
    %v96 = vrot.slane %v94, 1
    %v99 = vmul.f32 %v68, %v94
    %v100 = vmul.f32 %v69, %v96
    %v101 = vadd.f32 %v99, 1e-40
    %v102 = vadd.f32 %v100, 1e-40
    %v103 = vlog2.pop %v101
    %v104 = vmul.f32 %v103, 0.6931472
    %v105 = vlog2.pop %v102
    %v106 = vmul.f32 %v105, 0.6931472
    %v109 = vrot.slane %v106, 7
    %v110 = vsel %vm73, %v109, %v104
    %112 = vst.msk [vmem:[#allocation5] sm:$0x3] %vm76, %v110
    // Predicated region
    $region18: #{tpu_custom_call.1} parent=1 // pred_check
      _
    $region19: #{tpu_custom_call.1} parent=1 // pred_check_branch
      %114 = sbr.rel (0) target = $region21
    $region20: #{tpu_custom_call.1} parent=1 // pred_region
      %116 = vsyncadd [#allocation4], 0
      %s118 = sshll.u32 [#allocation5], 4
      %s119 = int_to_ptr.vmem [resolvable:$true] %s118
      %s120 = sshll.u32 %s3, 4
      %s121 = int_to_ptr.hbm [resolvable:$true] %s120
      %123 = dma.vmem_to_hbm [thread:$0]  %s119, 32, %s121, [#allocation4]
    $region21: #{tpu_custom_call.1} parent=1 // pred_fallthru
      _
    // Predicated region
    $region22: #{tpu_custom_call.1} parent=1 // pred_check
      _
    $region23: #{tpu_custom_call.1} parent=1 // pred_check_branch
      %125 = sbr.rel (0) target = $region25
    $region24: #{tpu_custom_call.1} parent=1 // pred_region
      %127 = dma.done [#allocation4], 32
    $region25: #{tpu_custom_call.1} parent=1 // pred_fallthru
      _
    %128 = vsyncpa [#allocation3], 1
    %129 = vsyncpa [#allocation4], 1

</llo_original>
